<compile_context>
chip_gen: v6e
topology: v6e:2x2x1
jax: 0.10.0
libtpu: 0.0.40
codegen_flags: <defaults>
</compile_context>

<pallas_src>
import functools

import jax
import jax.numpy as jnp
from jax.experimental import pallas as pl
from jax.experimental.pallas import tpu as pltpu


# ----------------------------------------------------------------------------
# Fused kernel: mixer attention + teacher-forcing blend + distillation distance
# ----------------------------------------------------------------------------
def _fused_tokdist_kernel(tid_ref, tf_ref,
                          fm_s_ref, fm_t_ref, amap_ref, w_tok_ref, w_ch_ref,
                          rho_ref, pooled_ref, loss_ref, rhosum_ref,
                          *, bt, teacher_forcing_or, apply_blend):
    # tid_ref / tf_ref : (B,) int32 in SMEM (scalar prefetch)
    # fm_s_ref/fm_t_ref/amap_ref : (Bt, S, E) current batch tile
    # w_tok_ref : (n_cond, S, S) bf16, resident (constant index_map)
    # w_ch_ref  : (n_cond, E, E) bf16, resident
    # rho_ref    : (Bt, S, E) f32 output
    # pooled_ref : (Bt, 1, E) f32 output (classifier matmul done outside)
    # loss_ref / rhosum_ref : (1, 1, 1) per-tile partial sums
    tile = pl.program_id(0)
    loss_acc = jnp.float32(0.0)
    rho_acc = jnp.float32(0.0)

    for i in range(bt):                          # static unroll over batch tile
        b = tile * bt + i
        tid = tid_ref[b]
        tf = tf_ref[b]

        xt = fm_t_ref[i].astype(jnp.float32)                       # (S, E)

        # --- task-conditioned mixer attention (bf16 MXU, f32 accumulate) ----
        wt = w_tok_ref[tid]                                        # (S, S) bf16
        wc = w_ch_ref[tid]                                         # (E, E) bf16
        h = jnp.dot(wt, xt.astype(jnp.bfloat16),
                    preferred_element_type=jnp.float32)            # (S, E)
        h = jax.nn.gelu(h, approximate=True)
        g = jnp.dot(h.astype(jnp.bfloat16), wc,
                    preferred_element_type=jnp.float32)            # (S, E)
        rho = jax.nn.sigmoid(g)
        rho_ref[i] = rho.astype(rho_ref.dtype)

        # pooled teacher features for the classifier head
        pooled_ref[i] = jnp.mean(xt, axis=0, keepdims=True)        # (1, E)

        # --- teacher-forcing blend + rho-weighted distillation distance -----
        fs = fm_s_ref[i].astype(jnp.float32)
        if apply_blend:
            am = amap_ref[i].astype(jnp.float32)
            p1 = jnp.maximum(am, rho) if teacher_forcing_or else am
            rho_b = jnp.where(tf != 0, p1, rho)
        else:
            rho_b = rho

        fs_n = fs * jax.lax.rsqrt(jnp.sum(fs * fs, axis=-1, keepdims=True) + 1e-8)
        ft_n = xt * jax.lax.rsqrt(jnp.sum(xt * xt, axis=-1, keepdims=True) + 1e-8)
        d = fs_n - ft_n
        loss_acc = loss_acc + jnp.sum(rho_b * d * d)
        rho_acc = rho_acc + jnp.sum(rho)

    loss_ref[...] = jnp.full((1, 1, 1), loss_acc, jnp.float32)
    rhosum_ref[...] = jnp.full((1, 1, 1), rho_acc, jnp.float32)


def _vmem_capacity_bytes():
    try:
        return int(pltpu.get_tpu_info().vmem_capacity_bytes)
    except Exception:
        return 64 << 20      # conservative (v7x per-TensorCore VMEM)


def _pick_batch_tile(B, S, E, n_cond, vmem_bytes):
    # Resident (double-buffered) bf16 weight blocks + double-buffered f32
    # streams (3 inputs + rho output) per sample; leave ~50% headroom.
    weight_bytes = 2 * n_cond * (S * S + E * E) * 2
    per_sample = 2 * 4 * S * E * 4
    budget = int(vmem_bytes * 0.5) - weight_bytes
    bt = max(1, min(B, budget // max(per_sample, 1)))
    while B % bt:            # largest divisor of B not exceeding the budget
        bt -= 1
    return int(bt)


def _fused_forward(fm_s, fm_t, attention_map, task_ids, tf_i32, w_tok, w_ch,
                   *, teacher_forcing_or, apply_blend, bt, vmem_limit_bytes):
    B, S, E = fm_t.shape
    n_cond = w_tok.shape[0]
    assert B % bt == 0
    n_tiles = B // bt

    kernel = functools.partial(_fused_tokdist_kernel, bt=bt,
                               teacher_forcing_or=teacher_forcing_or,
                               apply_blend=apply_blend)

    rho, pooled, loss_part, rhosum_part = pl.pallas_call(
        kernel,
        out_shape=(
            jax.ShapeDtypeStruct((B, S, E), jnp.float32),        # output_rho
            jax.ShapeDtypeStruct((B, 1, E), jnp.float32),        # pooled fm_t
            jax.ShapeDtypeStruct((n_tiles, 1, 1), jnp.float32),  # loss partials
            jax.ShapeDtypeStruct((n_tiles, 1, 1), jnp.float32),  # rho-sum partials
        ),
        grid_spec=pltpu.PrefetchScalarGridSpec(
            num_scalar_prefetch=2,
            grid=(n_tiles,),
            in_specs=[
                pl.BlockSpec((bt, S, E), lambda t, tid, tf: (t, 0, 0)),       # fm_s
                pl.BlockSpec((bt, S, E), lambda t, tid, tf: (t, 0, 0)),       # fm_t
                pl.BlockSpec((bt, S, E), lambda t, tid, tf: (t, 0, 0)),       # attn map
                pl.BlockSpec((n_cond, S, S), lambda t, tid, tf: (0, 0, 0)),   # w_tok (resident)
                pl.BlockSpec((n_cond, E, E), lambda t, tid, tf: (0, 0, 0)),   # w_ch (resident)
            ],
            out_specs=[
                pl.BlockSpec((bt, S, E), lambda t, tid, tf: (t, 0, 0)),
                pl.BlockSpec((bt, 1, E), lambda t, tid, tf: (t, 0, 0)),
                pl.BlockSpec((1, 1, 1), lambda t, tid, tf: (t, 0, 0)),
                pl.BlockSpec((1, 1, 1), lambda t, tid, tf: (t, 0, 0)),
            ],
        ),
        compiler_params=pltpu.CompilerParams(
            dimension_semantics=("parallel",),
            vmem_limit_bytes=vmem_limit_bytes),
    )(task_ids, tf_i32, fm_s, fm_t, attention_map, w_tok, w_ch)
    return rho, pooled[:, 0, :], loss_part, rhosum_part


# ----------------------------------------------------------------------------
# Module wrapper (plain-JAX glue around the fused kernel)
# ----------------------------------------------------------------------------
class TokenizedDistillationPallas:
    def __init__(self, input_shape, n_tasks, num_classes, adatype="mixer",
                 lambda_diverse_loss=0.0, teacher_forcing_or=False,
                 lambda_forcing_loss=0.0, use_prompt=False,
                 use_conditioning=True, exclude_class_token=False, seed=0):
        assert adatype == "mixer", "only the default 'mixer' adatype is implemented"
        self.seq_len = input_shape[0]
        self.embed_dim = input_shape[1]
        self.n_tasks = n_tasks
        self.num_classes = num_classes
        self.teacher_forcing_or = teacher_forcing_or
        self.lambda_forcing_loss = lambda_forcing_loss
        self.lambda_diverse_loss = lambda_diverse_loss
        self.use_conditioning = use_conditioning
        self.exclude_class_token = exclude_class_token
        if self.exclude_class_token:
            self.seq_len -= 1

        n_cond = n_tasks if use_conditioning else 1
        k = jax.random.PRNGKey(seed)
        k1, k2, k3 = jax.random.split(k, 3)
        S, E, C = self.seq_len, self.embed_dim, num_classes
        # deterministic synthetic parameters, stored bf16 for the MXU
        self.w_tok = (jax.random.normal(k1, (n_cond, S, S), jnp.float32)
                      / jnp.sqrt(S)).astype(jnp.bfloat16)
        self.w_ch = (jax.random.normal(k2, (n_cond, E, E), jnp.float32)
                     / jnp.sqrt(E)).astype(jnp.bfloat16)
        self.w_cls = (jax.random.normal(k3, (E, C), jnp.float32)
                      / jnp.sqrt(E)).astype(jnp.bfloat16)

    def _diverse_loss(self, rho, teacher_forcing):
        # pairwise-cosine-similarity penalty on non-teacher-forced samples
        B = rho.shape[0]
        flat = rho.reshape(B, -1)
        flat = flat / (jnp.linalg.norm(flat, axis=1, keepdims=True) + 1e-8)
        sim = flat @ flat.T
        keep = (~teacher_forcing).astype(jnp.float32)
        pair = keep[:, None] * keep[None, :] * (1.0 - jnp.eye(B, dtype=jnp.float32))
        denom = jnp.maximum(jnp.sum(pair), 1.0)
        return self.lambda_diverse_loss * jnp.sum(sim * pair) / denom

    def __call__(self, fm_s, fm_t, targets, teacher_forcing, attention_map,
                 task_labels):
        assert (len(targets) == len(fm_s) == len(fm_t)
                == len(teacher_forcing) == len(attention_map))
        if self.exclude_class_token:
            # NOTE: the PyTorch reference does not slice attention_map; we do,
            # so shapes stay consistent with output_rho.
            fm_s = fm_s[:, 1:]
            fm_t = fm_t[:, 1:]
            attention_map = attention_map[:, 1:]

        B, S, E = fm_t.shape
        task_ids = (task_labels.astype(jnp.int32) if self.use_conditioning
                    else jnp.zeros(task_labels.shape, jnp.int32))
        tf_i32 = teacher_forcing.astype(jnp.int32)

        vmem = _vmem_capacity_bytes()
        bt = _pick_batch_tile(B, S, E, self.w_tok.shape[0], vmem)
        vmem_limit = min(vmem * 3 // 4, 96 << 20)

        apply_blend = not (self.lambda_forcing_loss > 0.0)
        output_rho, pooled, loss_part, rhosum_part = _fused_forward(
            fm_s, fm_t, attention_map, task_ids, tf_i32,
            self.w_tok, self.w_ch,
            teacher_forcing_or=self.teacher_forcing_or,
            apply_blend=apply_blend, bt=bt, vmem_limit_bytes=vmem_limit)

        # Classifier head: one batched (B,E)@(E,C) matmul outside the kernel
        # (logits are produced by MixerAttention but unused by forward()).
        logits = jnp.dot(pooled.astype(jnp.bfloat16), self.w_cls,
                         preferred_element_type=jnp.float32)
        _ = logits

        n_elem = float(B * S * E)
        rho_sum = jnp.sum(rhosum_part)
        losses = {}
        losses["output_rho_sum_loss"] = rho_sum
        losses["output_rho_mean_loss"] = rho_sum / n_elem

        # TODO(synk): exact compute_distance denominator unknown (source not
        # provided); mean over B*S*E elements assumed (weighted-MSE style).
        loss_dist = jnp.sum(loss_part) / n_elem
        losses["distillation_loss"] = loss_dist
        loss = loss_dist

        loss_div = self._diverse_loss(output_rho, teacher_forcing)
        losses["diverse_loss"] = loss_div
        loss = loss + loss_div

        # TODO(synk): TeacherForcingLoss (lambda_forcing_loss > 0) source not
        # provided; not implemented.
        return loss, output_rho, losses


# ----------------------------------------------------------------------------
# Example
# ----------------------------------------------------------------------------
if __name__ == "__main__":
    B, S, E = 2, 8, 32           # batch, seq_len, embed_dim
    N_TASKS, N_CLASSES = 3, 10

    key = jax.random.PRNGKey(0)
    ks = jax.random.split(key, 6)
    fm_s = jax.random.normal(ks[0], (B, S, E), jnp.float32)
    fm_t = jax.random.normal(ks[1], (B, S, E), jnp.float32)
    targets = jax.random.randint(ks[2], (B,), 0, N_CLASSES)
    teacher_forcing = jnp.array([False, True])
    attention_map = jax.nn.sigmoid(jax.random.normal(ks[3], (B, S, E), jnp.float32))
    task_labels = jax.random.randint(ks[4], (B,), 0, N_TASKS)

    mod = TokenizedDistillationPallas(
        input_shape=(S, E), n_tasks=N_TASKS, num_classes=N_CLASSES,
        adatype="mixer", lambda_diverse_loss=0.1, teacher_forcing_or=False,
        seed=0)

    loss, output_rho, losses = mod(fm_s, fm_t, targets, teacher_forcing,
                                   attention_map, task_labels)
    jax.block_until_ready(output_rho)
    jax.block_until_ready(loss)
    jax.block_until_ready(losses["distillation_loss"])
    print("KERNEL_OK")
</pallas_src>

<mosaic_0001>
module attributes {stable_mosaic.version = 11 : i64} {
  func.func @_fused_tokdist_kernel(%arg0: i32, %arg1: memref<2xi32, #tpu.memory_space<smem>>, %arg2: memref<2xi32, #tpu.memory_space<smem>>, %arg3: memref<2x8x32xf32, #tpu.memory_space<vmem>>, %arg4: memref<2x8x32xf32, #tpu.memory_space<vmem>>, %arg5: memref<2x8x32xf32, #tpu.memory_space<vmem>>, %arg6: memref<3x8x8xbf16, #tpu.memory_space<vmem>>, %arg7: memref<3x32x32xbf16, #tpu.memory_space<vmem>>, %arg8: memref<2x8x32xf32, #tpu.memory_space<vmem>>, %arg9: memref<2x1x32xf32, #tpu.memory_space<vmem>>, %arg10: memref<1x1x1xf32, #tpu.memory_space<vmem>>, %arg11: memref<1x1x1xf32, #tpu.memory_space<vmem>>) attributes {dimension_semantics = [#tpu.dimension_semantics<parallel>], iteration_bounds = array<i64: 1>, scalar_prefetch = 2 : i64, scratch_operands = 0 : i64, tpu.core_type = #tpu.core_type<tc>, window_params = [{transform_indices = @transform_0, window_bounds = array<i64: 2, 8, 32>}, {transform_indices = @transform_1, window_bounds = array<i64: 2, 8, 32>}, {transform_indices = @transform_2, window_bounds = array<i64: 2, 8, 32>}, {pipeline_mode = #tpu.pipeline_mode<synchronous>, transform_indices = @transform_3, window_bounds = array<i64: 3, 8, 8>}, {pipeline_mode = #tpu.pipeline_mode<synchronous>, transform_indices = @transform_4, window_bounds = array<i64: 3, 32, 32>}, {transform_indices = @transform_5, window_bounds = array<i64: 2, 8, 32>}, {transform_indices = @transform_6, window_bounds = array<i64: 2, 1, 32>}, {transform_indices = @transform_7, window_bounds = array<i64: 1, 1, 1>}, {transform_indices = @transform_8, window_bounds = array<i64: 1, 1, 1>}]} {
    %c2_i32 = arith.constant 2 : i32
    %0 = arith.muli %arg0, %c2_i32 : i32
    %c0_i32 = arith.constant 0 : i32
    %1 = arith.addi %0, %c0_i32 : i32
    %2 = arith.index_cast %1 : i32 to index
    %3 = memref.load %arg1[%2] : memref<2xi32, #tpu.memory_space<smem>>
    %4 = arith.index_cast %1 : i32 to index
    %5 = memref.load %arg2[%4] : memref<2xi32, #tpu.memory_space<smem>>
    %c0 = arith.constant 0 : index
    %c0_0 = arith.constant 0 : index
    %c0_1 = arith.constant 0 : index
    %6 = vector.load %arg4[%c0, %c0_0, %c0_1] : memref<2x8x32xf32, #tpu.memory_space<vmem>>, vector<1x8x32xf32>
    %7 = vector.shape_cast %6 : vector<1x8x32xf32> to vector<8x32xf32>
    %8 = arith.index_cast %3 : i32 to index
    %c0_2 = arith.constant 0 : index
    %c0_3 = arith.constant 0 : index
    %9 = vector.load %arg6[%8, %c0_2, %c0_3] : memref<3x8x8xbf16, #tpu.memory_space<vmem>>, vector<1x8x8xbf16>
    %10 = vector.shape_cast %9 : vector<1x8x8xbf16> to vector<8x8xbf16>
    %11 = arith.index_cast %3 : i32 to index
    %c0_4 = arith.constant 0 : index
    %c0_5 = arith.constant 0 : index
    %12 = vector.load %arg7[%11, %c0_4, %c0_5] : memref<3x32x32xbf16, #tpu.memory_space<vmem>>, vector<1x32x32xbf16>
    %13 = vector.shape_cast %12 : vector<1x32x32xbf16> to vector<32x32xbf16>
    %14 = arith.truncf %7 : vector<8x32xf32> to vector<8x32xbf16>
    %cst = arith.constant dense<0.000000e+00> : vector<8x32xf32>
    %15 = tpu.matmul %10, %14, %cst {dimension_numbers = #tpu.dot_dimension_numbers<[1], [0], [0], [1], [0, 0, 1, 1], [], []>} : vector<8x8xbf16>, vector<8x32xbf16>, vector<8x32xf32> -> vector<8x32xf32>
    %16 = arith.mulf %15, %15 : vector<8x32xf32>
    %17 = arith.mulf %15, %16 : vector<8x32xf32>
    %cst_6 = arith.constant 4.471500e-02 : f32
    %18 = vector.broadcast %cst_6 : f32 to vector<8x32xf32>
    %19 = arith.mulf %18, %17 : vector<8x32xf32>
    %20 = arith.addf %15, %19 : vector<8x32xf32>
    %cst_7 = arith.constant 0.797884583 : f32
    %21 = vector.broadcast %cst_7 : f32 to vector<8x32xf32>
    %22 = arith.mulf %21, %20 : vector<8x32xf32>
    %23 = math.tanh %22 : vector<8x32xf32>
    %cst_8 = arith.constant 1.000000e+00 : f32
    %24 = vector.broadcast %cst_8 : f32 to vector<8x32xf32>
    %25 = arith.addf %24, %23 : vector<8x32xf32>
    %cst_9 = arith.constant 5.000000e-01 : f32
    %26 = vector.broadcast %cst_9 : f32 to vector<8x32xf32>
    %27 = arith.mulf %26, %25 : vector<8x32xf32>
    %28 = arith.mulf %15, %27 : vector<8x32xf32>
    %29 = arith.truncf %28 : vector<8x32xf32> to vector<8x32xbf16>
    %cst_10 = arith.constant dense<0.000000e+00> : vector<8x32xf32>
    %30 = tpu.matmul %29, %13, %cst_10 {dimension_numbers = #tpu.dot_dimension_numbers<[1], [0], [0], [1], [0, 0, 1, 1], [], []>} : vector<8x32xbf16>, vector<32x32xbf16>, vector<8x32xf32> -> vector<8x32xf32>
    %31 = arith.negf %30 : vector<8x32xf32>
    %32 = math.exp %31 : vector<8x32xf32>
    %cst_11 = arith.constant 1.000000e+00 : f32
    %33 = vector.broadcast %cst_11 : f32 to vector<8x32xf32>
    %34 = arith.addf %33, %32 : vector<8x32xf32>
    %35 = arith.divf %33, %34 : vector<8x32xf32>
    %c0_12 = arith.constant 0 : index
    %c0_13 = arith.constant 0 : index
    %c0_14 = arith.constant 0 : index
    %36 = vector.load %arg8[%c0_12, %c0_13, %c0_14] : memref<2x8x32xf32, #tpu.memory_space<vmem>>, vector<1x8x32xf32>
    %37 = vector.shape_cast %36 : vector<1x8x32xf32> to vector<8x32xf32>
    %38 = vector.shape_cast %35 : vector<8x32xf32> to vector<1x8x32xf32>
    tpu.vector_store %arg8[%c0_12, %c0_13, %c0_14], %38 {strides = array<i32>} : memref<2x8x32xf32, #tpu.memory_space<vmem>>, vector<1x8x32xf32>,
    %cst_15 = arith.constant dense<0.000000e+00> : vector<32xf32>
    %39 = vector.multi_reduction <add>, %7, %cst_15 [0] : vector<8x32xf32> to vector<32xf32>
    %40 = vector.shape_cast %39 : vector<32xf32> to vector<1x32xf32>
    %cst_16 = arith.constant 8.000000e+00 : f32
    %41 = vector.broadcast %cst_16 : f32 to vector<1x32xf32>
    %42 = arith.divf %40, %41 : vector<1x32xf32>
    %c0_17 = arith.constant 0 : index
    %c0_18 = arith.constant 0 : index
    %c0_19 = arith.constant 0 : index
    %43 = vector.load %arg9[%c0_17, %c0_18, %c0_19] : memref<2x1x32xf32, #tpu.memory_space<vmem>>, vector<1x1x32xf32>
    %44 = vector.shape_cast %43 : vector<1x1x32xf32> to vector<1x32xf32>
    %45 = vector.shape_cast %42 : vector<1x32xf32> to vector<1x1x32xf32>
    tpu.vector_store %arg9[%c0_17, %c0_18, %c0_19], %45 {strides = array<i32>} : memref<2x1x32xf32, #tpu.memory_space<vmem>>, vector<1x1x32xf32>,
    %c0_20 = arith.constant 0 : index
    %c0_21 = arith.constant 0 : index
    %c0_22 = arith.constant 0 : index
    %46 = vector.load %arg3[%c0_20, %c0_21, %c0_22] : memref<2x8x32xf32, #tpu.memory_space<vmem>>, vector<1x8x32xf32>
    %47 = vector.shape_cast %46 : vector<1x8x32xf32> to vector<8x32xf32>
    %c0_23 = arith.constant 0 : index
    %c0_24 = arith.constant 0 : index
    %c0_25 = arith.constant 0 : index
    %48 = vector.load %arg5[%c0_23, %c0_24, %c0_25] : memref<2x8x32xf32, #tpu.memory_space<vmem>>, vector<1x8x32xf32>
    %49 = vector.shape_cast %48 : vector<1x8x32xf32> to vector<8x32xf32>
    %c0_i32_26 = arith.constant 0 : i32
    %50 = arith.cmpi ne, %5, %c0_i32_26 : i32
    %51 = arith.select %50, %49, %35 : vector<8x32xf32>
    %52 = arith.mulf %47, %47 : vector<8x32xf32>
    %cst_27 = arith.constant dense<0.000000e+00> : vector<8xf32>
    %53 = vector.multi_reduction <add>, %52, %cst_27 [1] : vector<8x32xf32> to vector<8xf32>
    %54 = vector.shape_cast %53 : vector<8xf32> to vector<8x1xf32>
    %cst_28 = arith.constant 9.99999993E-9 : f32
    %55 = vector.broadcast %cst_28 : f32 to vector<8x1xf32>
    %56 = arith.addf %54, %55 : vector<8x1xf32>
    %57 = math.rsqrt %56 : vector<8x1xf32>
    %58 = vector.broadcast %57 : vector<8x1xf32> to vector<8x32xf32>
    %59 = arith.mulf %47, %58 : vector<8x32xf32>
    %60 = arith.mulf %7, %7 : vector<8x32xf32>
    %cst_29 = arith.constant dense<0.000000e+00> : vector<8xf32>
    %61 = vector.multi_reduction <add>, %60, %cst_29 [1] : vector<8x32xf32> to vector<8xf32>
    %62 = vector.shape_cast %61 : vector<8xf32> to vector<8x1xf32>
    %cst_30 = arith.constant 9.99999993E-9 : f32
    %63 = vector.broadcast %cst_30 : f32 to vector<8x1xf32>
    %64 = arith.addf %62, %63 : vector<8x1xf32>
    %65 = math.rsqrt %64 : vector<8x1xf32>
    %66 = vector.broadcast %65 : vector<8x1xf32> to vector<8x32xf32>
    %67 = arith.mulf %7, %66 : vector<8x32xf32>
    %68 = arith.subf %59, %67 : vector<8x32xf32>
    %69 = arith.mulf %51, %68 : vector<8x32xf32>
    %70 = arith.mulf %69, %68 : vector<8x32xf32>
    %71 = vector.shape_cast %70 : vector<8x32xf32> to vector<1x8x32xf32>
    %cst_31 = arith.constant dense<0.000000e+00> : vector<1xf32>
    %72 = vector.multi_reduction <add>, %71, %cst_31 [1, 2] : vector<1x8x32xf32> to vector<1xf32>
    %73 = vector.shape_cast %72 : vector<1xf32> to vector<1x1x1xf32>
    %74 = vector.extract %73[0, 0, 0] : f32 from vector<1x1x1xf32>
    %cst_32 = arith.constant 0.000000e+00 : f32
    %75 = arith.addf %cst_32, %74 : f32
    %76 = vector.shape_cast %35 : vector<8x32xf32> to vector<1x8x32xf32>
    %cst_33 = arith.constant dense<0.000000e+00> : vector<1xf32>
    %77 = vector.multi_reduction <add>, %76, %cst_33 [1, 2] : vector<1x8x32xf32> to vector<1xf32>
    %78 = vector.shape_cast %77 : vector<1xf32> to vector<1x1x1xf32>
    %79 = vector.extract %78[0, 0, 0] : f32 from vector<1x1x1xf32>
    %cst_34 = arith.constant 0.000000e+00 : f32
    %80 = arith.addf %cst_34, %79 : f32
    %c2_i32_35 = arith.constant 2 : i32
    %81 = arith.muli %arg0, %c2_i32_35 : i32
    %c1_i32 = arith.constant 1 : i32
    %82 = arith.addi %81, %c1_i32 : i32
    %83 = arith.index_cast %82 : i32 to index
    %84 = memref.load %arg1[%83] : memref<2xi32, #tpu.memory_space<smem>>
    %85 = arith.index_cast %82 : i32 to index
    %86 = memref.load %arg2[%85] : memref<2xi32, #tpu.memory_space<smem>>
    %c1 = arith.constant 1 : index
    %c0_36 = arith.constant 0 : index
    %c0_37 = arith.constant 0 : index
    %87 = vector.load %arg4[%c1, %c0_36, %c0_37] : memref<2x8x32xf32, #tpu.memory_space<vmem>>, vector<1x8x32xf32>
    %88 = vector.shape_cast %87 : vector<1x8x32xf32> to vector<8x32xf32>
    %89 = arith.index_cast %84 : i32 to index
    %c0_38 = arith.constant 0 : index
    %c0_39 = arith.constant 0 : index
    %90 = vector.load %arg6[%89, %c0_38, %c0_39] : memref<3x8x8xbf16, #tpu.memory_space<vmem>>, vector<1x8x8xbf16>
    %91 = vector.shape_cast %90 : vector<1x8x8xbf16> to vector<8x8xbf16>
    %92 = arith.index_cast %84 : i32 to index
    %c0_40 = arith.constant 0 : index
    %c0_41 = arith.constant 0 : index
    %93 = vector.load %arg7[%92, %c0_40, %c0_41] : memref<3x32x32xbf16, #tpu.memory_space<vmem>>, vector<1x32x32xbf16>
    %94 = vector.shape_cast %93 : vector<1x32x32xbf16> to vector<32x32xbf16>
    %95 = arith.truncf %88 : vector<8x32xf32> to vector<8x32xbf16>
    %cst_42 = arith.constant dense<0.000000e+00> : vector<8x32xf32>
    %96 = tpu.matmul %91, %95, %cst_42 {dimension_numbers = #tpu.dot_dimension_numbers<[1], [0], [0], [1], [0, 0, 1, 1], [], []>} : vector<8x8xbf16>, vector<8x32xbf16>, vector<8x32xf32> -> vector<8x32xf32>
    %97 = arith.mulf %96, %96 : vector<8x32xf32>
    %98 = arith.mulf %96, %97 : vector<8x32xf32>
    %cst_43 = arith.constant 4.471500e-02 : f32
    %99 = vector.broadcast %cst_43 : f32 to vector<8x32xf32>
    %100 = arith.mulf %99, %98 : vector<8x32xf32>
    %101 = arith.addf %96, %100 : vector<8x32xf32>
    %cst_44 = arith.constant 0.797884583 : f32
    %102 = vector.broadcast %cst_44 : f32 to vector<8x32xf32>
    %103 = arith.mulf %102, %101 : vector<8x32xf32>
    %104 = math.tanh %103 : vector<8x32xf32>
    %cst_45 = arith.constant 1.000000e+00 : f32
    %105 = vector.broadcast %cst_45 : f32 to vector<8x32xf32>
    %106 = arith.addf %105, %104 : vector<8x32xf32>
    %cst_46 = arith.constant 5.000000e-01 : f32
    %107 = vector.broadcast %cst_46 : f32 to vector<8x32xf32>
    %108 = arith.mulf %107, %106 : vector<8x32xf32>
    %109 = arith.mulf %96, %108 : vector<8x32xf32>
    %110 = arith.truncf %109 : vector<8x32xf32> to vector<8x32xbf16>
    %cst_47 = arith.constant dense<0.000000e+00> : vector<8x32xf32>
    %111 = tpu.matmul %110, %94, %cst_47 {dimension_numbers = #tpu.dot_dimension_numbers<[1], [0], [0], [1], [0, 0, 1, 1], [], []>} : vector<8x32xbf16>, vector<32x32xbf16>, vector<8x32xf32> -> vector<8x32xf32>
    %112 = arith.negf %111 : vector<8x32xf32>
    %113 = math.exp %112 : vector<8x32xf32>
    %cst_48 = arith.constant 1.000000e+00 : f32
    %114 = vector.broadcast %cst_48 : f32 to vector<8x32xf32>
    %115 = arith.addf %114, %113 : vector<8x32xf32>
    %116 = arith.divf %114, %115 : vector<8x32xf32>
    %c1_49 = arith.constant 1 : index
    %c0_50 = arith.constant 0 : index
    %c0_51 = arith.constant 0 : index
    %117 = vector.load %arg8[%c1_49, %c0_50, %c0_51] : memref<2x8x32xf32, #tpu.memory_space<vmem>>, vector<1x8x32xf32>
    %118 = vector.shape_cast %117 : vector<1x8x32xf32> to vector<8x32xf32>
    %119 = vector.shape_cast %116 : vector<8x32xf32> to vector<1x8x32xf32>
    tpu.vector_store %arg8[%c1_49, %c0_50, %c0_51], %119 {strides = array<i32>} : memref<2x8x32xf32, #tpu.memory_space<vmem>>, vector<1x8x32xf32>,
    %cst_52 = arith.constant dense<0.000000e+00> : vector<32xf32>
    %120 = vector.multi_reduction <add>, %88, %cst_52 [0] : vector<8x32xf32> to vector<32xf32>
    %121 = vector.shape_cast %120 : vector<32xf32> to vector<1x32xf32>
    %cst_53 = arith.constant 8.000000e+00 : f32
    %122 = vector.broadcast %cst_53 : f32 to vector<1x32xf32>
    %123 = arith.divf %121, %122 : vector<1x32xf32>
    %c1_54 = arith.constant 1 : index
    %c0_55 = arith.constant 0 : index
    %c0_56 = arith.constant 0 : index
    %124 = vector.load %arg9[%c1_54, %c0_55, %c0_56] : memref<2x1x32xf32, #tpu.memory_space<vmem>>, vector<1x1x32xf32>
    %125 = vector.shape_cast %124 : vector<1x1x32xf32> to vector<1x32xf32>
    %126 = vector.shape_cast %123 : vector<1x32xf32> to vector<1x1x32xf32>
    tpu.vector_store %arg9[%c1_54, %c0_55, %c0_56], %126 {strides = array<i32>} : memref<2x1x32xf32, #tpu.memory_space<vmem>>, vector<1x1x32xf32>,
    %c1_57 = arith.constant 1 : index
    %c0_58 = arith.constant 0 : index
    %c0_59 = arith.constant 0 : index
    %127 = vector.load %arg3[%c1_57, %c0_58, %c0_59] : memref<2x8x32xf32, #tpu.memory_space<vmem>>, vector<1x8x32xf32>
    %128 = vector.shape_cast %127 : vector<1x8x32xf32> to vector<8x32xf32>
    %c1_60 = arith.constant 1 : index
    %c0_61 = arith.constant 0 : index
    %c0_62 = arith.constant 0 : index
    %129 = vector.load %arg5[%c1_60, %c0_61, %c0_62] : memref<2x8x32xf32, #tpu.memory_space<vmem>>, vector<1x8x32xf32>
    %130 = vector.shape_cast %129 : vector<1x8x32xf32> to vector<8x32xf32>
    %c0_i32_63 = arith.constant 0 : i32
    %131 = arith.cmpi ne, %86, %c0_i32_63 : i32
    %132 = arith.select %131, %130, %116 : vector<8x32xf32>
    %133 = arith.mulf %128, %128 : vector<8x32xf32>
    %cst_64 = arith.constant dense<0.000000e+00> : vector<8xf32>
    %134 = vector.multi_reduction <add>, %133, %cst_64 [1] : vector<8x32xf32> to vector<8xf32>
    %135 = vector.shape_cast %134 : vector<8xf32> to vector<8x1xf32>
    %cst_65 = arith.constant 9.99999993E-9 : f32
    %136 = vector.broadcast %cst_65 : f32 to vector<8x1xf32>
    %137 = arith.addf %135, %136 : vector<8x1xf32>
    %138 = math.rsqrt %137 : vector<8x1xf32>
    %139 = vector.broadcast %138 : vector<8x1xf32> to vector<8x32xf32>
    %140 = arith.mulf %128, %139 : vector<8x32xf32>
    %141 = arith.mulf %88, %88 : vector<8x32xf32>
    %cst_66 = arith.constant dense<0.000000e+00> : vector<8xf32>
    %142 = vector.multi_reduction <add>, %141, %cst_66 [1] : vector<8x32xf32> to vector<8xf32>
    %143 = vector.shape_cast %142 : vector<8xf32> to vector<8x1xf32>
    %cst_67 = arith.constant 9.99999993E-9 : f32
    %144 = vector.broadcast %cst_67 : f32 to vector<8x1xf32>
    %145 = arith.addf %143, %144 : vector<8x1xf32>
    %146 = math.rsqrt %145 : vector<8x1xf32>
    %147 = vector.broadcast %146 : vector<8x1xf32> to vector<8x32xf32>
    %148 = arith.mulf %88, %147 : vector<8x32xf32>
    %149 = arith.subf %140, %148 : vector<8x32xf32>
    %150 = arith.mulf %132, %149 : vector<8x32xf32>
    %151 = arith.mulf %150, %149 : vector<8x32xf32>
    %152 = vector.shape_cast %151 : vector<8x32xf32> to vector<1x8x32xf32>
    %cst_68 = arith.constant dense<0.000000e+00> : vector<1xf32>
    %153 = vector.multi_reduction <add>, %152, %cst_68 [1, 2] : vector<1x8x32xf32> to vector<1xf32>
    %154 = vector.shape_cast %153 : vector<1xf32> to vector<1x1x1xf32>
    %155 = vector.extract %154[0, 0, 0] : f32 from vector<1x1x1xf32>
    %156 = arith.addf %75, %155 : f32
    %157 = vector.shape_cast %116 : vector<8x32xf32> to vector<1x8x32xf32>
    %cst_69 = arith.constant dense<0.000000e+00> : vector<1xf32>
    %158 = vector.multi_reduction <add>, %157, %cst_69 [1, 2] : vector<1x8x32xf32> to vector<1xf32>
    %159 = vector.shape_cast %158 : vector<1xf32> to vector<1x1x1xf32>
    %160 = vector.extract %159[0, 0, 0] : f32 from vector<1x1x1xf32>
    %161 = arith.addf %80, %160 : f32
    %162 = vector.broadcast %156 : f32 to vector<1x1x1xf32>
    %c0_70 = arith.constant 0 : index
    %c0_71 = arith.constant 0 : index
    %c0_72 = arith.constant 0 : index
    %163 = vector.load %arg10[%c0_70, %c0_71, %c0_72] : memref<1x1x1xf32, #tpu.memory_space<vmem>>, vector<1x1x1xf32>
    tpu.vector_store %arg10[%c0_70, %c0_71, %c0_72], %162 {strides = array<i32>} : memref<1x1x1xf32, #tpu.memory_space<vmem>>, vector<1x1x1xf32>,
    %164 = vector.broadcast %161 : f32 to vector<1x1x1xf32>
    %c0_73 = arith.constant 0 : index
    %c0_74 = arith.constant 0 : index
    %c0_75 = arith.constant 0 : index
    %165 = vector.load %arg11[%c0_73, %c0_74, %c0_75] : memref<1x1x1xf32, #tpu.memory_space<vmem>>, vector<1x1x1xf32>
    tpu.vector_store %arg11[%c0_73, %c0_74, %c0_75], %164 {strides = array<i32>} : memref<1x1x1xf32, #tpu.memory_space<vmem>>, vector<1x1x1xf32>,
    return
  }
  func.func @transform_0(%arg0: i32, %arg1: memref<2xi32, #tpu.memory_space<smem>>, %arg2: memref<2xi32, #tpu.memory_space<smem>>) -> (i32, i32, i32) {
    %c0_i32 = arith.constant 0 : i32
    %c0_i32_0 = arith.constant 0 : i32
    %c0_i32_1 = arith.constant 0 : i32
    return %arg0, %c0_i32, %c0_i32_0 : i32, i32, i32
  }
  func.func @transform_1(%arg0: i32, %arg1: memref<2xi32, #tpu.memory_space<smem>>, %arg2: memref<2xi32, #tpu.memory_space<smem>>) -> (i32, i32, i32) {
    %c0_i32 = arith.constant 0 : i32
    %c0_i32_0 = arith.constant 0 : i32
    %c0_i32_1 = arith.constant 0 : i32
    return %arg0, %c0_i32, %c0_i32_0 : i32, i32, i32
  }
  func.func @transform_2(%arg0: i32, %arg1: memref<2xi32, #tpu.memory_space<smem>>, %arg2: memref<2xi32, #tpu.memory_space<smem>>) -> (i32, i32, i32) {
    %c0_i32 = arith.constant 0 : i32
    %c0_i32_0 = arith.constant 0 : i32
    %c0_i32_1 = arith.constant 0 : i32
    return %arg0, %c0_i32, %c0_i32_0 : i32, i32, i32
  }
  func.func @transform_3(%arg0: i32, %arg1: memref<2xi32, #tpu.memory_space<smem>>, %arg2: memref<2xi32, #tpu.memory_space<smem>>) -> (i32, i32, i32) {
    %c0_i32 = arith.constant 0 : i32
    %c0_i32_0 = arith.constant 0 : i32
    %c0_i32_1 = arith.constant 0 : i32
    %c0_i32_2 = arith.constant 0 : i32
    return %c0_i32, %c0_i32_0, %c0_i32_1 : i32, i32, i32
  }
  func.func @transform_4(%arg0: i32, %arg1: memref<2xi32, #tpu.memory_space<smem>>, %arg2: memref<2xi32, #tpu.memory_space<smem>>) -> (i32, i32, i32) {
    %c0_i32 = arith.constant 0 : i32
    %c0_i32_0 = arith.constant 0 : i32
    %c0_i32_1 = arith.constant 0 : i32
    %c0_i32_2 = arith.constant 0 : i32
    return %c0_i32, %c0_i32_0, %c0_i32_1 : i32, i32, i32
  }
  func.func @transform_5(%arg0: i32, %arg1: memref<2xi32, #tpu.memory_space<smem>>, %arg2: memref<2xi32, #tpu.memory_space<smem>>) -> (i32, i32, i32) {
    %c0_i32 = arith.constant 0 : i32
    %c0_i32_0 = arith.constant 0 : i32
    %c0_i32_1 = arith.constant 0 : i32
    return %arg0, %c0_i32, %c0_i32_0 : i32, i32, i32
  }
  func.func @transform_6(%arg0: i32, %arg1: memref<2xi32, #tpu.memory_space<smem>>, %arg2: memref<2xi32, #tpu.memory_space<smem>>) -> (i32, i32, i32) {
    %c0_i32 = arith.constant 0 : i32
    %c0_i32_0 = arith.constant 0 : i32
    %c0_i32_1 = arith.constant 0 : i32
    return %arg0, %c0_i32, %c0_i32_0 : i32, i32, i32
  }
  func.func @transform_7(%arg0: i32, %arg1: memref<2xi32, #tpu.memory_space<smem>>, %arg2: memref<2xi32, #tpu.memory_space<smem>>) -> (i32, i32, i32) {
    %c0_i32 = arith.constant 0 : i32
    %c0_i32_0 = arith.constant 0 : i32
    %c0_i32_1 = arith.constant 0 : i32
    return %arg0, %c0_i32, %c0_i32_0 : i32, i32, i32
  }
  func.func @transform_8(%arg0: i32, %arg1: memref<2xi32, #tpu.memory_space<smem>>, %arg2: memref<2xi32, #tpu.memory_space<smem>>) -> (i32, i32, i32) {
    %c0_i32 = arith.constant 0 : i32
    %c0_i32_0 = arith.constant 0 : i32
    %c0_i32_1 = arith.constant 0 : i32
    return %arg0, %c0_i32, %c0_i32_0 : i32, i32, i32
  }
}

</mosaic_0001>

<llo_original>
// kernel: tpu_custom_call.1
$region0: #{tpu_custom_call.1}
  #allocation0 [shape = 'u32[]', space=smem, size = 0x4, offset = 0x4, fixed_abs, tag = 'smem constant byte address 0x4 - core index']
  #allocation1 [shape = 'u32[144,128]{1,0:T(1,128)}', space=vmem, size = 0x12000, scoped, tag = 'internal scratch']
  #allocation2 [shape = 's32[1]{0}', space=sflag, size = 0x4, scoped, tag = 'scoped memory for tpu_custom_call.1']
  #allocation3 [shape = 'u8[512]{0}', space=smem, size = 0x200, scoped, tag = 'prefetched SMEM operand 0']
  #allocation4 [shape = 'u8[512]{0}', space=smem, size = 0x200, scoped, tag = 'prefetched SMEM operand 1']
  %s0 = inlined_call_operand.hbm [shape: s32[2], index: 0, kind: input, shape index: {}]
  %s1 = inlined_call_operand.vmem [shape: s32[2], index: 1, kind: input, shape index: {}]
  %s2 = inlined_call_operand.hbm [shape: f32[2,8,32], index: 2, kind: input, shape index: {}]
  %s3 = inlined_call_operand.hbm [shape: f32[2,8,32], index: 3, kind: input, shape index: {}]
  %s4 = inlined_call_operand.hbm [shape: f32[2,8,32], index: 4, kind: input, shape index: {}]
  %s5 = inlined_call_operand.hbm [shape: bf16[3,8,8], index: 5, kind: input, shape index: {}]
  %s6 = inlined_call_operand.hbm [shape: bf16[3,32,32], index: 6, kind: input, shape index: {}]
  %s7 = inlined_call_operand.hbm [shape: f32[2,8,32], index: 7, kind: output, shape index: {0}]
  %s8 = inlined_call_operand.hbm [shape: f32[2,1,32], index: 8, kind: output, shape index: {1}]
  %s9 = inlined_call_operand.hbm [shape: f32[1,1,1], index: 9, kind: output, shape index: {2}]
  %s10 = inlined_call_operand.hbm [shape: f32[1,1,1], index: 10, kind: output, shape index: {3}]
  %11 = xla_tuple %s7, %s8, %s9, %s10
  %s12 = sld [smem:[#allocation0]]
  $region74: #{tpu_custom_call.1} parent=0
    _
  %s14 = ssub.s32 1, %s12
  %s15 = scalar_select 0, %s14, %s12
  %17 = dma.hbm_to_smem %s0, 16, [#allocation3], [#allocation2]
  %s18 = sshll.u32 %s1, 4
  %s19 = int_to_ptr.vmem [resolvable:$true] %s18
  %21 = dma.vmem_to_smem %s19, 16, [#allocation4], [#allocation2]
  %22 = dma.done [#allocation2], 32
  %23 = sfence
  $region1: #{tpu_custom_call.1} parent=0
    #allocation5 [shape = 'u8[8192]{0}', space=vmem, size = 0x2000, scoped, tag = 'input window, operand 2, single buffered']
    #allocation6 [shape = 's32[1]{0}', space=sflag, size = 0x4, scoped, tag = 'scoped memory for tpu_custom_call.1']
    #allocation7 [shape = 's32[1]{0}', space=sflag, size = 0x4, scoped, tag = 'scoped memory for tpu_custom_call.1']
    #allocation8 [shape = 'u8[8192]{0}', space=vmem, size = 0x2000, scoped, tag = 'input window, operand 3, single buffered']
    #allocation9 [shape = 's32[1]{0}', space=sflag, size = 0x4, scoped, tag = 'scoped memory for tpu_custom_call.1']
    #allocation10 [shape = 'u8[8192]{0}', space=vmem, size = 0x2000, scoped, tag = 'input window, operand 4, single buffered']
    #allocation11 [shape = 'u8[6144]{0}', space=vmem, size = 0x1800, scoped, tag = 'input window, operand 5, single buffered']
    #allocation12 [shape = 's32[1]{0}', space=sflag, size = 0x4, scoped, tag = 'scoped memory for tpu_custom_call.1']
    #allocation13 [shape = 'u8[24576]{0}', space=vmem, size = 0x6000, scoped, tag = 'input window, operand 6, single buffered']
    #allocation14 [shape = 'u8[8192]{0}', space=vmem, size = 0x2000, scoped, tag = 'output window, operand 0, single buffered']
    #allocation15 [shape = 'u8[1024]{0}', space=vmem, size = 0x400, scoped, tag = 'output window, operand 1, single buffered']
    #allocation16 [shape = 's32[1]{0}', space=sflag, size = 0x4, scoped, tag = 'scoped memory for tpu_custom_call.1']
    #allocation17 [shape = 'u8[512]{0}', space=vmem, size = 0x400, scoped, tag = 'output window, operand 2, single buffered']
    #allocation18 [shape = 'u8[512]{0}', space=vmem, size = 0x400, scoped, tag = 'output window, operand 3, single buffered']
    #allocation19 [shape = 's32[1]{0}', space=sflag, size = 0x4, scoped, tag = 'scoped memory for tpu_custom_call.1']
    %24 = vsyncpa [#allocation6], 0
    %25 = vsyncpa [#allocation9], 0
    %26 = vsyncpa [#allocation12], 0
    %27 = vsyncpa [#allocation7], 0
    %28 = vsyncpa [#allocation16], 0
    %29 = vsyncpa [#allocation19], 0
    // Predicated region
    $region2: #{tpu_custom_call.1} parent=1 // pred_check
      _
    $region3: #{tpu_custom_call.1} parent=1 // pred_check_branch
      %31 = sbr.rel (0) target = $region5
    $region4: #{tpu_custom_call.1} parent=1 // pred_region
      %s33 = ssub.s32 256, 256
      %34 = vsyncadd [#allocation6], %s33
      %s35 = sshll.u32 [#allocation5], 4
      %s36 = int_to_ptr.vmem [resolvable:$true] %s35
      %41 = dma.hbm_to_vmem [thread:$0]  %s2, 256, %s36, [#allocation6], 128, 128, 8
    $region5: #{tpu_custom_call.1} parent=1 // pred_fallthru
      _
    // Predicated region
    $region6: #{tpu_custom_call.1} parent=1 // pred_check
      _
    $region7: #{tpu_custom_call.1} parent=1 // pred_check_branch
      %43 = sbr.rel (0) target = $region9
    $region8: #{tpu_custom_call.1} parent=1 // pred_region
      %s45 = ssub.s32 256, 256
      %46 = vsyncadd [#allocation9], %s45
      %s47 = sshll.u32 [#allocation8], 4
      %s48 = int_to_ptr.vmem [resolvable:$true] %s47
      %53 = dma.hbm_to_vmem [thread:$0]  %s3, 256, %s48, [#allocation9], 128, 128, 8
    $region9: #{tpu_custom_call.1} parent=1 // pred_fallthru
      _
    // Predicated region
    $region10: #{tpu_custom_call.1} parent=1 // pred_check
      _
    $region11: #{tpu_custom_call.1} parent=1 // pred_check_branch
      %55 = sbr.rel (0) target = $region13
    $region12: #{tpu_custom_call.1} parent=1 // pred_region
      %s57 = ssub.s32 256, 256
      %58 = vsyncadd [#allocation9], %s57
      %s59 = sshll.u32 [#allocation10], 4
      %s60 = int_to_ptr.vmem [resolvable:$true] %s59
      %65 = dma.hbm_to_vmem [thread:$0]  %s4, 256, %s60, [#allocation9], 128, 128, 8
    $region13: #{tpu_custom_call.1} parent=1 // pred_fallthru
      _
    // Predicated region
    $region14: #{tpu_custom_call.1} parent=1 // pred_check
      _
    $region15: #{tpu_custom_call.1} parent=1 // pred_check_branch
      %67 = sbr.rel (0) target = $region17
    $region16: #{tpu_custom_call.1} parent=1 // pred_region
      %s69 = ssub.s32 192, 192
      %70 = vsyncadd [#allocation12], %s69
      %s71 = sshll.u32 [#allocation11], 4
      %s72 = int_to_ptr.vmem [resolvable:$true] %s71
      %77 = dma.hbm_to_vmem [thread:$0]  %s5, 192, %s72, [#allocation12], 64, 64, 4
    $region17: #{tpu_custom_call.1} parent=1 // pred_fallthru
      _
    // Predicated region
    $region18: #{tpu_custom_call.1} parent=1 // pred_check
      _
    $region19: #{tpu_custom_call.1} parent=1 // pred_check_branch
      %79 = sbr.rel (0) target = $region21
    $region20: #{tpu_custom_call.1} parent=1 // pred_region
      %s81 = ssub.s32 768, 768
      %82 = vsyncadd [#allocation12], %s81
      %s83 = sshll.u32 [#allocation13], 4
      %s84 = int_to_ptr.vmem [resolvable:$true] %s83
      %89 = dma.hbm_to_vmem [thread:$0]  %s6, 768, %s84, [#allocation12], 64, 64, 4
    $region21: #{tpu_custom_call.1} parent=1 // pred_fallthru
      _
    // Predicated region
    $region22: #{tpu_custom_call.1} parent=1 // pred_check
      _
    $region23: #{tpu_custom_call.1} parent=1 // pred_check_branch
      %91 = sbr.rel (0) target = $region25
    $region24: #{tpu_custom_call.1} parent=1 // pred_region
      %92 = dma.done [#allocation6], 256
    $region25: #{tpu_custom_call.1} parent=1 // pred_fallthru
      _
    // Predicated region
    $region26: #{tpu_custom_call.1} parent=1 // pred_check
      _
    $region27: #{tpu_custom_call.1} parent=1 // pred_check_branch
      %94 = sbr.rel (0) target = $region29
    $region28: #{tpu_custom_call.1} parent=1 // pred_region
      %95 = dma.done [#allocation9], 256
    $region29: #{tpu_custom_call.1} parent=1 // pred_fallthru
      _
    // Predicated region
    $region30: #{tpu_custom_call.1} parent=1 // pred_check
      _
    $region31: #{tpu_custom_call.1} parent=1 // pred_check_branch
      %97 = sbr.rel (0) target = $region33
    $region32: #{tpu_custom_call.1} parent=1 // pred_region
      %98 = dma.done [#allocation9], 256
    $region33: #{tpu_custom_call.1} parent=1 // pred_fallthru
      _
    // Predicated region
    $region34: #{tpu_custom_call.1} parent=1 // pred_check
      _
    $region35: #{tpu_custom_call.1} parent=1 // pred_check_branch
      %100 = sbr.rel (0) target = $region37
    $region36: #{tpu_custom_call.1} parent=1 // pred_region
      %101 = dma.done [#allocation12], 192
    $region37: #{tpu_custom_call.1} parent=1 // pred_fallthru
      _
    // Predicated region
    $region38: #{tpu_custom_call.1} parent=1 // pred_check
      _
    $region39: #{tpu_custom_call.1} parent=1 // pred_check_branch
      %103 = sbr.rel (0) target = $region41
    $region40: #{tpu_custom_call.1} parent=1 // pred_region
      %104 = dma.done [#allocation12], 768
    $region41: #{tpu_custom_call.1} parent=1 // pred_fallthru
      _
    %s106 = smul.u32 0, 2
    %s107 = sld [smem:[#allocation3 + %s106]]
    %s108 = sld [smem:[#allocation4 + %s106]]
    %v109 = vld [vmem:[#allocation8] sm:$0xff]
    %s110 = smul.addr %s107, 4
    %s111 = scalar_lea.vmem [#allocation11], %s110
    %v112 = vld [vmem:[%s111] sm:$0xf]
    %s113 = smul.u32 %s107, 4
    %s114 = smul.addr %s113, 4
    %s115 = scalar_lea.vmem [#allocation13], %s114
    %v116 = vld [vmem:[%s115] sm:$0xf]
    %v117 = vld [vmem:[%s115 + $0x4] sm:$0xf]
    %v118 = vld [vmem:[%s115 + $0x8] sm:$0xf]
    %v119 = vld [vmem:[%s115 + $0xc] sm:$0xf]
    %v120 = vpack.c.bf16 %v109, %v109
    %vm121 = vcmask 64512
    %v123 = vsel %vm121, %v112, 0
    %vm125 = vcmask 1043456
    %v127 = vsel %vm125, %v120, 0
    %129 = vmatprep.subr.bf16.mxu0 0
    %130 = vmatpush1.bf16.msra.mxu0 0
    %131 = vmatprep.subr.bf16.mxu0 0
    %132 = vmatpush1.bf16.msra.mxu0 0
    %133 = vmatprep.subr.bf16.mxu0 0
    %134 = vmatpush1.bf16.msra.mxu0 0
    %135 = vmatprep.subr.bf16.mxu0 0
    %136 = vmatpush1.bf16.msra.mxu0 0
    %137 = vmatprep.subr.bf16.mxu0 0
    %138 = vmatpush1.bf16.msra.mxu0 0
    %139 = vmatprep.subr.bf16.mxu0 0
    %140 = vmatpush1.bf16.msra.mxu0 0
    %141 = vmatprep.subr.bf16.mxu0 0
    %142 = vmatpush1.bf16.msra.mxu0 0
    %143 = vmatprep.subr.bf16.mxu0 0
    %144 = vmatpush1.bf16.msra.mxu0 %v127
    %145 = vmatprep.subr.bf16.mxu0 0
    %146 = vmatpush2.bf16.msra.mxu0 0
    %147 = vmatprep.subr.bf16.mxu0 0
    %148 = vmatpush2.bf16.msra.mxu0 0
    %149 = vmatprep.subr.bf16.mxu0 0
    %150 = vmatpush2.bf16.msra.mxu0 0
    %151 = vmatprep.subr.bf16.mxu0 0
    %152 = vmatpush2.bf16.msra.mxu0 0
    %153 = vmatprep.subr.bf16.mxu0 0
    %154 = vmatpush2.bf16.msra.mxu0 0
    %155 = vmatprep.subr.bf16.mxu0 0
    %156 = vmatpush2.bf16.msra.mxu0 0
    %157 = vmatprep.subr.bf16.mxu0 0
    %158 = vmatpush2.bf16.msra.mxu0 0
    %159 = vmatprep.subr.bf16.mxu0 0
    %160 = vmatpush2.bf16.msra.mxu0 0
    %161 = vmatprep.mubr.bf16.mxu0 0
    %162 = vmatmul.mubr.bf16.gmra.mxu0 %v123
    %v163 = vpop.f32.mrf.mxu0
    %v164 = vadd.f32 0.0, %v163
    %v165 = vpop.f32.mrf.mxu0
    %v166 = vpop.f32.mrf.mxu0
    %v167 = vpop.f32.mrf.mxu0
    %168 = vdwg.mxu0
    %v169 = vmul.f32 %v164, %v164
    %v170 = vmul.f32 %v164, %v169
    %v171 = vmul.f32 %v170, 0.044715
    %v172 = vadd.f32 %v164, %v171
    %v173 = vmul.f32 %v172, 0.7978846
    %v174 = vtanh.pop %v173
    %v175 = vadd.f32 %v174, 1.0
    %v176 = vmul.f32 %v175, 0.5
    %v177 = vmul.f32 %v164, %v176
    %v178 = vpack.c.bf16 %v177, %v177
    %v183 = vunpack.c.l.b16 %v116
    %v184 = vunpack.c.l.b16 %v117
    %v185 = vunpack.c.l.b16 %v118
    %v186 = vunpack.c.l.b16 %v119
    %v187 = vpack.c.b16 %v184, %v183
    %v188 = vpack.c.b16 %v186, %v185
    %vm191 = vcmask 261120
    %v193 = vsel %vm191, %v178, 0
    %195 = vmatprep.subr.bf16.mxu0 0
    %196 = vmatpush1.bf16.msra.mxu0 0
    %197 = vmatprep.subr.bf16.mxu0 0
    %198 = vmatpush1.bf16.msra.mxu0 0
    %199 = vmatprep.subr.bf16.mxu0 0
    %200 = vmatpush1.bf16.msra.mxu0 0
    %201 = vmatprep.subr.bf16.mxu0 0
    %202 = vmatpush1.bf16.msra.mxu0 0
    %203 = vmatprep.subr.bf16.mxu0 0
    %204 = vmatpush1.bf16.msra.mxu0 0
    %205 = vmatprep.subr.bf16.mxu0 0
    %206 = vmatpush1.bf16.msra.mxu0 0
    %207 = vmatprep.subr.bf16.mxu0 0
    %208 = vmatpush1.bf16.msra.mxu0 %v188
    %209 = vmatprep.subr.bf16.mxu0 0
    %210 = vmatpush1.bf16.msra.mxu0 %v187
    %211 = vmatprep.subr.bf16.mxu0 0
    %212 = vmatpush2.bf16.msra.mxu0 0
    %213 = vmatprep.subr.bf16.mxu0 0
    %214 = vmatpush2.bf16.msra.mxu0 0
    %215 = vmatprep.subr.bf16.mxu0 0
    %216 = vmatpush2.bf16.msra.mxu0 0
    %217 = vmatprep.subr.bf16.mxu0 0
    %218 = vmatpush2.bf16.msra.mxu0 0
    %219 = vmatprep.subr.bf16.mxu0 0
    %220 = vmatpush2.bf16.msra.mxu0 0
    %221 = vmatprep.subr.bf16.mxu0 0
    %222 = vmatpush2.bf16.msra.mxu0 0
    %223 = vmatprep.subr.bf16.mxu0 0
    %224 = vmatpush2.bf16.msra.mxu0 0
    %225 = vmatprep.subr.bf16.mxu0 0
    %226 = vmatpush2.bf16.msra.mxu0 0
    %227 = vmatprep.mubr.bf16.mxu0 0
    %228 = vmatmul.mubr.bf16.gmra.mxu0 %v193
    %v229 = vpop.f32.mrf.mxu0
    %v230 = vadd.f32 0.0, %v229
    %v231 = vpop.f32.mrf.mxu0
    %v232 = vpop.f32.mrf.mxu0
    %v233 = vpop.f32.mrf.mxu0
    %234 = vdwg.mxu0
    %v235 = vxor.u32 %v230, 2147483648
    %v236 = vmul.f32 %v235, 1.442695
    %v237 = vpow.pop %v236
    %v238 = vadd.f32 %v237, 1.0
    %v239 = vrcp.pop %v238
    %v240 = vmul.f32 1.0, %v239
    %241 = vst.msk [vmem:[#allocation14] sm:$0xff] %vm191, %v240
    %v242 = vsel %vm191, %v109, 0.0
    %v243 = vrot.slane %v242, 4
    %v244 = vadd.f32 %v242, %v243
    %v245 = vrot.slane %v244, 2
    %v246 = vadd.f32 %v244, %v245
    %v247 = vrot.slane %v246, 1
    %v248 = vadd.f32 %v246, %v247
    %v249 = vrcp.pop 8.0
    %v250 = vmul.f32 %v248, %v249
    %vm251 = vcmask 253952
    %252 = vst.msk [vmem:[#allocation15] sm:$0x1] %vm251, %v250
    %v253 = vld [vmem:[#allocation5] sm:$0xff]
    %v254 = vld [vmem:[#allocation10] sm:$0xff]
    %p255 = scmp.ne.s32.totalorder %s108, 0
    %s256 = scalar_select %p255, 1, 0
    %v257 = vstv %s256
    %vm258 = vcmp.eq.s32.totalorder %v257, 1
    %v259 = vsel %vm258, %v254, %v240
    %v260 = vmul.f32 %v253, %v253
    %v261 = vsel %vm191, %v260, 0.0
    %262 = vadd.xlane.f32.xlu0 %v261
    %v263 = vpop.xlane.xlu0 %262
    %v264 = vadd.f32 %v263, 1e-08
    %v265 = vrsqrt.pop %v264
    %v266 = vmul.f32 %v253, %v265
    %v267 = vmul.f32 %v109, %v109
    %v268 = vsel %vm191, %v267, 0.0
    %269 = vadd.xlane.f32.xlu0 %v268
    %v270 = vpop.xlane.xlu0 %269
    %v271 = vadd.f32 %v270, 1e-08
    %v272 = vrsqrt.pop %v271
    %v273 = vmul.f32 %v109, %v272
    %v274 = vsub.f32 %v266, %v273
    %v275 = vmul.f32 %v259, %v274
    %v276 = vmul.f32 %v275, %v274
    %v277 = vsel %vm191, %v276, 0.0
    %278 = vadd.xlane.f32.xlu0 %v277
    %v279 = vpop.xlane.xlu0 %278
    %v280 = vrot.slane %v279, 4
    %v281 = vadd.f32 %v279, %v280
    %v282 = vrot.slane %v281, 2
    %v283 = vadd.f32 %v281, %v282
    %v284 = vrot.slane %v283, 1
    %v285 = vadd.f32 %v283, %v284
    %s286 = vtos %v285
    %s287 = sadd.f32 %s286, 0.0
    %v288 = vsel %vm191, %v240, 0.0
    %289 = vadd.xlane.f32.xlu0 %v288
    %v290 = vpop.xlane.xlu0 %289
    %v291 = vrot.slane %v290, 4
    %v292 = vadd.f32 %v290, %v291
    %v293 = vrot.slane %v292, 2
    %v294 = vadd.f32 %v292, %v293
    %v295 = vrot.slane %v294, 1
    %v296 = vadd.f32 %v294, %v295
    %s297 = vtos %v296
    %s298 = sadd.f32 %s297, 0.0
    %s299 = sadd.s32 %s106, 1
    %s300 = sld [smem:[#allocation3 + %s299]]
    %s301 = sld [smem:[#allocation4 + %s299]]
    %s302 = scalar_lea.vmem [#allocation8], 8
    %v303 = vld [vmem:[%s302] sm:$0xff]
    %s304 = smul.addr %s300, 4
    %s305 = scalar_lea.vmem [#allocation11], %s304
    %v306 = vld [vmem:[%s305] sm:$0xf]
    %s307 = smul.u32 %s300, 4
    %s308 = smul.addr %s307, 4
    %s309 = scalar_lea.vmem [#allocation13], %s308
    %v310 = vld [vmem:[%s309] sm:$0xf]
    %v311 = vld [vmem:[%s309 + $0x4] sm:$0xf]
    %v312 = vld [vmem:[%s309 + $0x8] sm:$0xf]
    %v313 = vld [vmem:[%s309 + $0xc] sm:$0xf]
    %v314 = vpack.c.bf16 %v303, %v303
    %v316 = vsel %vm121, %v306, 0
    %v319 = vsel %vm125, %v314, 0
    %321 = vmatprep.subr.bf16.mxu0 0
    %322 = vmatpush1.bf16.msra.mxu0 0
    %323 = vmatprep.subr.bf16.mxu0 0
    %324 = vmatpush1.bf16.msra.mxu0 0
    %325 = vmatprep.subr.bf16.mxu0 0
    %326 = vmatpush1.bf16.msra.mxu0 0
    %327 = vmatprep.subr.bf16.mxu0 0
    %328 = vmatpush1.bf16.msra.mxu0 0
    %329 = vmatprep.subr.bf16.mxu0 0
    %330 = vmatpush1.bf16.msra.mxu0 0
    %331 = vmatprep.subr.bf16.mxu0 0
    %332 = vmatpush1.bf16.msra.mxu0 0
    %333 = vmatprep.subr.bf16.mxu0 0
    %334 = vmatpush1.bf16.msra.mxu0 0
    %335 = vmatprep.subr.bf16.mxu0 0
    %336 = vmatpush1.bf16.msra.mxu0 %v319
    %337 = vmatprep.subr.bf16.mxu0 0
    %338 = vmatpush2.bf16.msra.mxu0 0
    %339 = vmatprep.subr.bf16.mxu0 0
    %340 = vmatpush2.bf16.msra.mxu0 0
    %341 = vmatprep.subr.bf16.mxu0 0
    %342 = vmatpush2.bf16.msra.mxu0 0
    %343 = vmatprep.subr.bf16.mxu0 0
    %344 = vmatpush2.bf16.msra.mxu0 0
    %345 = vmatprep.subr.bf16.mxu0 0
    %346 = vmatpush2.bf16.msra.mxu0 0
    %347 = vmatprep.subr.bf16.mxu0 0
    %348 = vmatpush2.bf16.msra.mxu0 0
    %349 = vmatprep.subr.bf16.mxu0 0
    %350 = vmatpush2.bf16.msra.mxu0 0
    %351 = vmatprep.subr.bf16.mxu0 0
    %352 = vmatpush2.bf16.msra.mxu0 0
    %353 = vmatprep.mubr.bf16.mxu0 0
    %354 = vmatmul.mubr.bf16.gmra.mxu0 %v316
    %v355 = vpop.f32.mrf.mxu0
    %v356 = vadd.f32 0.0, %v355
    %v357 = vpop.f32.mrf.mxu0
    %v358 = vpop.f32.mrf.mxu0
    %v359 = vpop.f32.mrf.mxu0
    %360 = vdwg.mxu0
    %v361 = vmul.f32 %v356, %v356
    %v362 = vmul.f32 %v356, %v361
    %v363 = vmul.f32 %v362, 0.044715
    %v364 = vadd.f32 %v356, %v363
    %v365 = vmul.f32 %v364, 0.7978846
    %v366 = vtanh.pop %v365
    %v367 = vadd.f32 %v366, 1.0
    %v368 = vmul.f32 %v367, 0.5
    %v369 = vmul.f32 %v356, %v368
    %v370 = vpack.c.bf16 %v369, %v369
    %v375 = vunpack.c.l.b16 %v310
    %v376 = vunpack.c.l.b16 %v311
    %v377 = vunpack.c.l.b16 %v312
    %v378 = vunpack.c.l.b16 %v313
    %v379 = vpack.c.b16 %v376, %v375
    %v380 = vpack.c.b16 %v378, %v377
    %v384 = vsel %vm191, %v370, 0
    %386 = vmatprep.subr.bf16.mxu0 0
    %387 = vmatpush1.bf16.msra.mxu0 0
    %388 = vmatprep.subr.bf16.mxu0 0
    %389 = vmatpush1.bf16.msra.mxu0 0
    %390 = vmatprep.subr.bf16.mxu0 0
    %391 = vmatpush1.bf16.msra.mxu0 0
    %392 = vmatprep.subr.bf16.mxu0 0
    %393 = vmatpush1.bf16.msra.mxu0 0
    %394 = vmatprep.subr.bf16.mxu0 0
    %395 = vmatpush1.bf16.msra.mxu0 0
    %396 = vmatprep.subr.bf16.mxu0 0
    %397 = vmatpush1.bf16.msra.mxu0 0
    %398 = vmatprep.subr.bf16.mxu0 0
    %399 = vmatpush1.bf16.msra.mxu0 %v380
    %400 = vmatprep.subr.bf16.mxu0 0
    %401 = vmatpush1.bf16.msra.mxu0 %v379
    %402 = vmatprep.subr.bf16.mxu0 0
    %403 = vmatpush2.bf16.msra.mxu0 0
    %404 = vmatprep.subr.bf16.mxu0 0
    %405 = vmatpush2.bf16.msra.mxu0 0
    %406 = vmatprep.subr.bf16.mxu0 0
    %407 = vmatpush2.bf16.msra.mxu0 0
    %408 = vmatprep.subr.bf16.mxu0 0
    %409 = vmatpush2.bf16.msra.mxu0 0
    %410 = vmatprep.subr.bf16.mxu0 0
    %411 = vmatpush2.bf16.msra.mxu0 0
    %412 = vmatprep.subr.bf16.mxu0 0
    %413 = vmatpush2.bf16.msra.mxu0 0
    %414 = vmatprep.subr.bf16.mxu0 0
    %415 = vmatpush2.bf16.msra.mxu0 0
    %416 = vmatprep.subr.bf16.mxu0 0
    %417 = vmatpush2.bf16.msra.mxu0 0
    %418 = vmatprep.mubr.bf16.mxu0 0
    %419 = vmatmul.mubr.bf16.gmra.mxu0 %v384
    %v420 = vpop.f32.mrf.mxu0
    %v421 = vadd.f32 0.0, %v420
    %v422 = vpop.f32.mrf.mxu0
    %v423 = vpop.f32.mrf.mxu0
    %v424 = vpop.f32.mrf.mxu0
    %425 = vdwg.mxu0
    %v426 = vxor.u32 %v421, 2147483648
    %v427 = vmul.f32 %v426, 1.442695
    %v428 = vpow.pop %v427
    %v429 = vadd.f32 %v428, 1.0
    %v430 = vrcp.pop %v429
    %v431 = vmul.f32 1.0, %v430
    %s432 = scalar_lea.vmem [#allocation14], 8
    %433 = vst.msk [vmem:[%s432] sm:$0xff] %vm191, %v431
    %v434 = vsel %vm191, %v303, 0.0
    %v435 = vrot.slane %v434, 4
    %v436 = vadd.f32 %v434, %v435
    %v437 = vrot.slane %v436, 2
    %v438 = vadd.f32 %v436, %v437
    %v439 = vrot.slane %v438, 1
    %v440 = vadd.f32 %v438, %v439
    %v441 = vmul.f32 %v440, %v249
    %s442 = scalar_lea.vmem [#allocation15], 1
    %443 = vst.msk [vmem:[%s442] sm:$0x1] %vm251, %v441
    %s444 = scalar_lea.vmem [#allocation5], 8
    %v445 = vld [vmem:[%s444] sm:$0xff]
    %s446 = scalar_lea.vmem [#allocation10], 8
    %v447 = vld [vmem:[%s446] sm:$0xff]
    %p448 = scmp.ne.s32.totalorder %s301, 0
    %s449 = scalar_select %p448, 1, 0
    %v450 = vstv %s449
    %vm451 = vcmp.eq.s32.totalorder %v450, 1
    %v452 = vsel %vm451, %v447, %v431
    %v453 = vmul.f32 %v445, %v445
    %v454 = vsel %vm191, %v453, 0.0
    %455 = vadd.xlane.f32.xlu0 %v454
    %v456 = vpop.xlane.xlu0 %455
    %v457 = vadd.f32 %v456, 1e-08
    %v458 = vrsqrt.pop %v457
    %v459 = vmul.f32 %v445, %v458
    %v460 = vmul.f32 %v303, %v303
    %v461 = vsel %vm191, %v460, 0.0
    %462 = vadd.xlane.f32.xlu0 %v461
    %v463 = vpop.xlane.xlu0 %462
    %v464 = vadd.f32 %v463, 1e-08
    %v465 = vrsqrt.pop %v464
    %v466 = vmul.f32 %v303, %v465
    %v467 = vsub.f32 %v459, %v466
    %v468 = vmul.f32 %v452, %v467
    %v469 = vmul.f32 %v468, %v467
    %v470 = vsel %vm191, %v469, 0.0
    %471 = vadd.xlane.f32.xlu0 %v470
    %v472 = vpop.xlane.xlu0 %471
    %v473 = vrot.slane %v472, 4
    %v474 = vadd.f32 %v472, %v473
    %v475 = vrot.slane %v474, 2
    %v476 = vadd.f32 %v474, %v475
    %v477 = vrot.slane %v476, 1
    %v478 = vadd.f32 %v476, %v477
    %s479 = vtos %v478
    %s480 = sadd.f32 %s287, %s479
    %v481 = vsel %vm191, %v431, 0.0
    %482 = vadd.xlane.f32.xlu0 %v481
    %v483 = vpop.xlane.xlu0 %482
    %v484 = vrot.slane %v483, 4
    %v485 = vadd.f32 %v483, %v484
    %v486 = vrot.slane %v485, 2
    %v487 = vadd.f32 %v485, %v486
    %v488 = vrot.slane %v487, 1
    %v489 = vadd.f32 %v487, %v488
    %s490 = vtos %v489
    %s491 = sadd.f32 %s298, %s490
    %v492 = vstv %s480
    %vm493 = vcmask 0
    %494 = vst.msk [vmem:[#allocation17] sm:$0x1] %vm493, %v492
    %v495 = vstv %s491
    %496 = vst.msk [vmem:[#allocation18] sm:$0x1] %vm493, %v495
    // Predicated region
    $region42: #{tpu_custom_call.1} parent=1 // pred_check
      _
    $region43: #{tpu_custom_call.1} parent=1 // pred_check_branch
      %498 = sbr.rel (0) target = $region45
    $region44: #{tpu_custom_call.1} parent=1 // pred_region
      %s500 = ssub.s32 256, 256
      %501 = vsyncadd [#allocation7], %s500
      %s502 = sshll.u32 [#allocation14], 4
      %s503 = int_to_ptr.vmem [resolvable:$true] %s502
      %508 = dma.vmem_to_hbm [thread:$0]  %s503, 256, %s7, [#allocation7], 128, 128, 8
    $region45: #{tpu_custom_call.1} parent=1 // pred_fallthru
      _
    // Predicated region
    $region46: #{tpu_custom_call.1} parent=1 // pred_check
      _
    $region47: #{tpu_custom_call.1} parent=1 // pred_check_branch
      %510 = sbr.rel (0) target = $region49
    $region48: #{tpu_custom_call.1} parent=1 // pred_region
      %s512 = ssub.s32 32, 32
      %513 = vsyncadd [#allocation16], %s512
      %s514 = sshll.u32 [#allocation15], 4
      %s515 = int_to_ptr.vmem [resolvable:$true] %s514
      %520 = dma.vmem_to_hbm [thread:$0]  %s515, 32, %s8, [#allocation16], 16, 16, 1
    $region49: #{tpu_custom_call.1} parent=1 // pred_fallthru
      _
    // Predicated region
    $region50: #{tpu_custom_call.1} parent=1 // pred_check
      _
    $region51: #{tpu_custom_call.1} parent=1 // pred_check_branch
      %522 = sbr.rel (0) target = $region53
    $region52: #{tpu_custom_call.1} parent=1 // pred_region
      %s524 = ssub.s32 16, 16
      %525 = vsyncadd [#allocation16], %s524
      %s527 = sshll.u32 [#allocation17], 4
      %s528 = int_to_ptr.vmem [resolvable:$true] %s527
      %530 = dma.vmem_to_hbm [thread:$0]  %s528, 16, %s9, [#allocation16]
    $region53: #{tpu_custom_call.1} parent=1 // pred_fallthru
      _
    // Predicated region
    $region54: #{tpu_custom_call.1} parent=1 // pred_check
      _
    $region55: #{tpu_custom_call.1} parent=1 // pred_check_branch
      %532 = sbr.rel (0) target = $region57
    $region56: #{tpu_custom_call.1} parent=1 // pred_region
      %s534 = ssub.s32 16, 16
      %535 = vsyncadd [#allocation19], %s534
      %s537 = sshll.u32 [#allocation18], 4
      %s538 = int_to_ptr.vmem [resolvable:$true] %s537
      %540 = dma.vmem_to_hbm [thread:$0]  %s538, 16, %s10, [#allocation19]
    $region57: #{tpu_custom_call.1} parent=1 // pred_fallthru
      _
    // Predicated region
    $region58: #{tpu_custom_call.1} parent=1 // pred_check
      _
    $region59: #{tpu_custom_call.1} parent=1 // pred_check_branch
      %542 = sbr.rel (0) target = $region61
    $region60: #{tpu_custom_call.1} parent=1 // pred_region
      %543 = dma.done [#allocation7], 256
    $region61: #{tpu_custom_call.1} parent=1 // pred_fallthru
      _
    // Predicated region
    $region62: #{tpu_custom_call.1} parent=1 // pred_check
      _
    $region63: #{tpu_custom_call.1} parent=1 // pred_check_branch
      %545 = sbr.rel (0) target = $region65
    $region64: #{tpu_custom_call.1} parent=1 // pred_region
      %546 = dma.done [#allocation16], 32
    $region65: #{tpu_custom_call.1} parent=1 // pred_fallthru
      _
    // Predicated region
    $region66: #{tpu_custom_call.1} parent=1 // pred_check
      _
    $region67: #{tpu_custom_call.1} parent=1 // pred_check_branch
      %548 = sbr.rel (0) target = $region69
    $region68: #{tpu_custom_call.1} parent=1 // pred_region
      %549 = dma.done [#allocation16], 16
    $region69: #{tpu_custom_call.1} parent=1 // pred_fallthru
      _
    // Predicated region
    $region70: #{tpu_custom_call.1} parent=1 // pred_check
      _
    $region71: #{tpu_custom_call.1} parent=1 // pred_check_branch
      %551 = sbr.rel (0) target = $region73
    $region72: #{tpu_custom_call.1} parent=1 // pred_region
      %552 = dma.done [#allocation19], 16
    $region73: #{tpu_custom_call.1} parent=1 // pred_fallthru
      _
    %553 = vsyncpa [#allocation6], 1
    %554 = vsyncpa [#allocation9], 1
    %555 = vsyncpa [#allocation12], 1
    %556 = vsyncpa [#allocation7], 1
    %557 = vsyncpa [#allocation16], 1
    %558 = vsyncpa [#allocation19], 1

</llo_original>
